<compile_context>
chip_gen: v6e
topology: v6e:2x2x1
jax: 0.10.0
libtpu: 0.0.40
codegen_flags: <defaults>
</compile_context>

<pallas_src>
import jax
import jax.numpy as jnp
from jax import lax
from jax.experimental import pallas as pl
from jax.experimental.pallas import tpu as pltpu

EPS = 1e-5
LANE = 128
TM_TARGET = 512                    # rows per M-tile; 512 fits comfortably in VMEM on
                                   # v5e/v6e/v7x even with large K (tune upward on v5e).
VMEM_LIMIT = 48 * 1024 * 1024      # explicit scoped-VMEM limit (< 64 MiB v7x physical).


def _round_up(x, m):
    return ((x + m - 1) // m) * m


# ----------------------------------------------------------------------------------
# Pass 1: conv-as-matmul + per-channel sum / sumsq accumulation.
# ----------------------------------------------------------------------------------
def _conv_stats_kernel(p_ref, w_ref, y_ref, sum_ref, sq_ref):
    i = pl.program_id(0)

    # bf16 operands, f32 accumulation on the MXU.
    y = jnp.dot(p_ref[...], w_ref[...], preferred_element_type=jnp.float32)
    y_ref[...] = y

    @pl.when(i == 0)
    def _init():
        sum_ref[...] = jnp.zeros_like(sum_ref)
        sq_ref[...] = jnp.zeros_like(sq_ref)

    # Resident accumulator outputs (block index constant across the grid).
    sum_ref[...] += jnp.sum(y, axis=0, keepdims=True)
    sq_ref[...] += jnp.sum(y * y, axis=0, keepdims=True)


# ----------------------------------------------------------------------------------
# Pass 2: normalize / scale / shift (per-channel affine, precomputed in wrapper).
# ----------------------------------------------------------------------------------
def _bn_apply_kernel(y_ref, scale_ref, shift_ref, out_ref):
    out_ref[...] = (y_ref[...] * scale_ref[...] + shift_ref[...]).astype(out_ref.dtype)


def encoder_single_block_1(x_nchw, w, b, gamma, beta):
    """x_nchw: [N, Cin, H, W]; w: [Cout, Cin, 4, 4]; b/gamma/beta: [Cout].

    Note: `b` (conv bias) is accepted for API fidelity but mathematically cancels
    under train-mode BatchNorm centering, so it is not used.
    """
    del b
    N, Cin, H, W = x_nchw.shape
    Cout = w.shape[0]
    KH, KW, stride, pad = 4, 4, 2, 1
    Ho = (H + 2 * pad - KH) // stride + 1
    Wo = (W + 2 * pad - KW) // stride + 1

    M = N * Ho * Wo
    K = KH * KW * Cin

    # Padded / tiled dimensions (lane-dense output, (8,128)-friendly blocks).
    cout_p = _round_up(Cout, LANE)
    k_p = _round_up(K, LANE)
    tm = min(TM_TARGET, _round_up(M, 256))
    m_p = _round_up(M, tm)
    n_tiles = m_p // tm

    # --- glue: NCHW -> NHWC, pad, im2col ------------------------------------------
    x = jnp.transpose(x_nchw, (0, 2, 3, 1))                        # [N,H,W,Cin]
    xp = jnp.pad(x, ((0, 0), (pad, pad), (pad, pad), (0, 0)))      # [N,H+2,W+2,Cin]
    patch_list = [
        xp[:, kh:kh + stride * Ho:stride, kw:kw + stride * Wo:stride, :]
        for kh in range(KH) for kw in range(KW)
    ]                                                              # each [N,Ho,Wo,Cin]
    patches = jnp.stack(patch_list, axis=3).reshape(M, K)          # [M, K]
    patches = jnp.pad(patches, ((0, m_p - M), (0, k_p - K))).astype(jnp.bfloat16)

    # Weight reorder to match the patch K-axis order (kh, kw, cin), then pad.
    w_mat = jnp.transpose(w, (2, 3, 1, 0)).reshape(K, Cout)
    w_mat = jnp.pad(w_mat, ((0, k_p - K), (0, cout_p - Cout))).astype(jnp.bfloat16)

    gamma_row = jnp.pad(gamma.astype(jnp.float32), (0, cout_p - Cout)).reshape(1, cout_p)
    beta_row = jnp.pad(beta.astype(jnp.float32), (0, cout_p - Cout)).reshape(1, cout_p)

    # --- pass 1: tiled matmul + channel statistics ---------------------------------
    flops = 2 * m_p * k_p * cout_p
    bytes_accessed = patches.size * 2 + w_mat.size * 2 + m_p * cout_p * 4
    y, ch_sum, ch_sq = pl.pallas_call(
        _conv_stats_kernel,
        out_shape=(
            jax.ShapeDtypeStruct((m_p, cout_p), jnp.float32),
            jax.ShapeDtypeStruct((1, cout_p), jnp.float32),
            jax.ShapeDtypeStruct((1, cout_p), jnp.float32),
        ),
        grid=(n_tiles,),
        in_specs=[
            pl.BlockSpec((tm, k_p), lambda i: (i, 0)),
            pl.BlockSpec((k_p, cout_p), lambda i: (0, 0)),
        ],
        out_specs=(
            pl.BlockSpec((tm, cout_p), lambda i: (i, 0)),
            pl.BlockSpec((1, cout_p), lambda i: (0, 0)),
            pl.BlockSpec((1, cout_p), lambda i: (0, 0)),
        ),
        compiler_params=pltpu.CompilerParams(
            dimension_semantics=("arbitrary",),        # stats outputs are revisited
            vmem_limit_bytes=VMEM_LIMIT,
        ),
        cost_estimate=pl.CostEstimate(
            flops=int(flops), transcendentals=0, bytes_accessed=int(bytes_accessed)),
    )(patches, w_mat)

    # --- tiny epilogue: biased (train-mode) batch stats -> per-channel affine ------
    mean = ch_sum / jnp.float32(M)                 # zero-pad rows contribute 0 (no bias)
    var = jnp.maximum(ch_sq / jnp.float32(M) - mean * mean, 0.0)
    inv_std = lax.rsqrt(var + EPS)
    scale = gamma_row * inv_std                    # [1, cout_p]
    shift = beta_row - mean * scale                # [1, cout_p]

    # --- pass 2: tiled normalize (lane-dense output, megacore-parallel) ------------
    out = pl.pallas_call(
        _bn_apply_kernel,
        out_shape=jax.ShapeDtypeStruct((m_p, cout_p), jnp.float32),
        grid=(n_tiles,),
        in_specs=[
            pl.BlockSpec((tm, cout_p), lambda i: (i, 0)),
            pl.BlockSpec((1, cout_p), lambda i: (0, 0)),
            pl.BlockSpec((1, cout_p), lambda i: (0, 0)),
        ],
        out_specs=pl.BlockSpec((tm, cout_p), lambda i: (i, 0)),
        compiler_params=pltpu.CompilerParams(
            dimension_semantics=("parallel",),
            vmem_limit_bytes=VMEM_LIMIT,
        ),
    )(y, scale, shift)

    # --- glue: slice off padding, back to NCHW --------------------------------------
    out = out[:M, :Cout].reshape(N, Ho, Wo, Cout)
    return jnp.transpose(out, (0, 3, 1, 2))                        # [N, Cout, Ho, Wo]


def _reference(x_nchw, w, b, gamma, beta):
    """Pure-JAX f32 reference (conv + train-mode batchnorm)."""
    y = lax.conv_general_dilated(
        x_nchw.astype(jnp.float32), w.astype(jnp.float32),
        window_strides=(2, 2), padding=((1, 1), (1, 1)),
        dimension_numbers=("NCHW", "OIHW", "NCHW"),
    ) + b.reshape(1, -1, 1, 1)
    mean = jnp.mean(y, axis=(0, 2, 3), keepdims=True)
    var = jnp.mean((y - mean) ** 2, axis=(0, 2, 3), keepdims=True)
    return gamma.reshape(1, -1, 1, 1) * (y - mean) / jnp.sqrt(var + EPS) \
        + beta.reshape(1, -1, 1, 1)


if __name__ == "__main__":
    key = jax.random.PRNGKey(0)
    N, Cin, H, W = 2, 4, 16, 16
    Cout = Cin * 2

    k_x, k_w, k_b, k_g, k_be = jax.random.split(key, 5)
    x = jax.random.normal(k_x, (N, Cin, H, W), dtype=jnp.float32)
    w = jax.random.normal(k_w, (Cout, Cin, 4, 4), dtype=jnp.float32) * 0.1
    b = jax.random.normal(k_b, (Cout,), dtype=jnp.float32) * 0.1
    gamma = jnp.ones((Cout,), dtype=jnp.float32) \
        + 0.1 * jax.random.normal(k_g, (Cout,), dtype=jnp.float32)
    beta = 0.1 * jax.random.normal(k_be, (Cout,), dtype=jnp.float32)

    out = jax.jit(encoder_single_block_1)(x, w, b, gamma, beta)
    out = jax.block_until_ready(out)

    ref = _reference(x, w, b, gamma, beta)
    assert out.shape == (N, Cout, H // 2, W // 2), out.shape
    # bf16 MXU operands vs. full-f32 reference -> relaxed tolerance.
    assert jnp.allclose(out, ref, atol=2e-2, rtol=2e-2), \
        float(jnp.max(jnp.abs(out - ref)))

    print("KERNEL_OK")
</pallas_src>

<mosaic_0001>
module attributes {stable_mosaic.version = 11 : i64} {
  func.func @_conv_stats_kernel(%arg0: i32, %arg1: memref<256x128xbf16, #tpu.memory_space<vmem>>, %arg2: memref<128x128xbf16, #tpu.memory_space<vmem>>, %arg3: memref<256x128xf32, #tpu.memory_space<vmem>>, %arg4: memref<1x128xf32, #tpu.memory_space<vmem>>, %arg5: memref<1x128xf32, #tpu.memory_space<vmem>>) attributes {dimension_semantics = [#tpu.dimension_semantics<arbitrary>], iteration_bounds = array<i64: 1>, scalar_prefetch = 0 : i64, scratch_operands = 0 : i64, tpu.core_type = #tpu.core_type<tc>, window_params = [{transform_indices = @transform_0, window_bounds = array<i64: 256, 128>}, {pipeline_mode = #tpu.pipeline_mode<synchronous>, transform_indices = @transform_1, window_bounds = array<i64: 128, 128>}, {transform_indices = @transform_2, window_bounds = array<i64: 256, 128>}, {pipeline_mode = #tpu.pipeline_mode<synchronous>, transform_indices = @transform_3, window_bounds = array<i64: 1, 128>}, {pipeline_mode = #tpu.pipeline_mode<synchronous>, transform_indices = @transform_4, window_bounds = array<i64: 1, 128>}]} {
    %c0 = arith.constant 0 : index
    %c0_0 = arith.constant 0 : index
    %0 = vector.load %arg1[%c0, %c0_0] : memref<256x128xbf16, #tpu.memory_space<vmem>>, vector<256x128xbf16>
    %c0_1 = arith.constant 0 : index
    %c0_2 = arith.constant 0 : index
    %1 = vector.load %arg2[%c0_1, %c0_2] : memref<128x128xbf16, #tpu.memory_space<vmem>>, vector<128x128xbf16>
    %cst = arith.constant dense<0.000000e+00> : vector<256x128xf32>
    %2 = tpu.matmul %0, %1, %cst {dimension_numbers = #tpu.dot_dimension_numbers<[1], [0], [0], [1], [0, 0, 1, 1], [], []>} : vector<256x128xbf16>, vector<128x128xbf16>, vector<256x128xf32> -> vector<256x128xf32>
    %c0_3 = arith.constant 0 : index
    %c0_4 = arith.constant 0 : index
    %3 = vector.load %arg3[%c0_3, %c0_4] : memref<256x128xf32, #tpu.memory_space<vmem>>, vector<256x128xf32>
    tpu.vector_store %arg3[%c0_3, %c0_4], %2 {strides = array<i32>} : memref<256x128xf32, #tpu.memory_space<vmem>>, vector<256x128xf32>,
    %c0_i32 = arith.constant 0 : i32
    %4 = arith.cmpi eq, %arg0, %c0_i32 : i32
    %5 = arith.extui %4 : i1 to i32
    %c0_i32_5 = arith.constant 0 : i32
    %6 = arith.cmpi ne, %5, %c0_i32_5 : i32
    scf.if %6 {
      %cst_16 = arith.constant 0.000000e+00 : f32
      %18 = vector.broadcast %cst_16 : f32 to vector<1x128xf32>
      %c0_17 = arith.constant 0 : index
      %c0_18 = arith.constant 0 : index
      %19 = vector.load %arg4[%c0_17, %c0_18] : memref<1x128xf32, #tpu.memory_space<vmem>>, vector<1x128xf32>
      tpu.vector_store %arg4[%c0_17, %c0_18], %18 {strides = array<i32>} : memref<1x128xf32, #tpu.memory_space<vmem>>, vector<1x128xf32>,
      %cst_19 = arith.constant 0.000000e+00 : f32
      %20 = vector.broadcast %cst_19 : f32 to vector<1x128xf32>
      %c0_20 = arith.constant 0 : index
      %c0_21 = arith.constant 0 : index
      %21 = vector.load %arg5[%c0_20, %c0_21] : memref<1x128xf32, #tpu.memory_space<vmem>>, vector<1x128xf32>
      tpu.vector_store %arg5[%c0_20, %c0_21], %20 {strides = array<i32>} : memref<1x128xf32, #tpu.memory_space<vmem>>, vector<1x128xf32>,
    } else {
    }
    %c0_6 = arith.constant 0 : index
    %c0_7 = arith.constant 0 : index
    %7 = vector.load %arg4[%c0_6, %c0_7] : memref<1x128xf32, #tpu.memory_space<vmem>>, vector<1x128xf32>
    %cst_8 = arith.constant dense<0.000000e+00> : vector<128xf32>
    %8 = vector.multi_reduction <add>, %2, %cst_8 [0] : vector<256x128xf32> to vector<128xf32>
    %9 = vector.shape_cast %8 : vector<128xf32> to vector<1x128xf32>
    %10 = arith.addf %7, %9 : vector<1x128xf32>
    %c0_9 = arith.constant 0 : index
    %c0_10 = arith.constant 0 : index
    %11 = vector.load %arg4[%c0_9, %c0_10] : memref<1x128xf32, #tpu.memory_space<vmem>>, vector<1x128xf32>
    tpu.vector_store %arg4[%c0_9, %c0_10], %10 {strides = array<i32>} : memref<1x128xf32, #tpu.memory_space<vmem>>, vector<1x128xf32>,
    %c0_11 = arith.constant 0 : index
    %c0_12 = arith.constant 0 : index
    %12 = vector.load %arg5[%c0_11, %c0_12] : memref<1x128xf32, #tpu.memory_space<vmem>>, vector<1x128xf32>
    %13 = arith.mulf %2, %2 : vector<256x128xf32>
    %cst_13 = arith.constant dense<0.000000e+00> : vector<128xf32>
    %14 = vector.multi_reduction <add>, %13, %cst_13 [0] : vector<256x128xf32> to vector<128xf32>
    %15 = vector.shape_cast %14 : vector<128xf32> to vector<1x128xf32>
    %16 = arith.addf %12, %15 : vector<1x128xf32>
    %c0_14 = arith.constant 0 : index
    %c0_15 = arith.constant 0 : index
    %17 = vector.load %arg5[%c0_14, %c0_15] : memref<1x128xf32, #tpu.memory_space<vmem>>, vector<1x128xf32>
    tpu.vector_store %arg5[%c0_14, %c0_15], %16 {strides = array<i32>} : memref<1x128xf32, #tpu.memory_space<vmem>>, vector<1x128xf32>,
    return
  }
  func.func @transform_0(%arg0: i32) -> (i32, i32) {
    %c0_i32 = arith.constant 0 : i32
    %c0_i32_0 = arith.constant 0 : i32
    return %arg0, %c0_i32 : i32, i32
  }
  func.func @transform_1(%arg0: i32) -> (i32, i32) {
    %c0_i32 = arith.constant 0 : i32
    %c0_i32_0 = arith.constant 0 : i32
    %c0_i32_1 = arith.constant 0 : i32
    return %c0_i32, %c0_i32_0 : i32, i32
  }
  func.func @transform_2(%arg0: i32) -> (i32, i32) {
    %c0_i32 = arith.constant 0 : i32
    %c0_i32_0 = arith.constant 0 : i32
    return %arg0, %c0_i32 : i32, i32
  }
  func.func @transform_3(%arg0: i32) -> (i32, i32) {
    %c0_i32 = arith.constant 0 : i32
    %c0_i32_0 = arith.constant 0 : i32
    %c0_i32_1 = arith.constant 0 : i32
    return %c0_i32, %c0_i32_0 : i32, i32
  }
  func.func @transform_4(%arg0: i32) -> (i32, i32) {
    %c0_i32 = arith.constant 0 : i32
    %c0_i32_0 = arith.constant 0 : i32
    %c0_i32_1 = arith.constant 0 : i32
    return %c0_i32, %c0_i32_0 : i32, i32
  }
}

module attributes {stable_mosaic.version = 11 : i64} {
  func.func @_bn_apply_kernel(%arg0: i32, %arg1: memref<256x128xf32, #tpu.memory_space<vmem>>, %arg2: memref<1x128xf32, #tpu.memory_space<vmem>>, %arg3: memref<1x128xf32, #tpu.memory_space<vmem>>, %arg4: memref<256x128xf32, #tpu.memory_space<vmem>>) attributes {dimension_semantics = [#tpu.dimension_semantics<parallel>], iteration_bounds = array<i64: 1>, scalar_prefetch = 0 : i64, scratch_operands = 0 : i64, tpu.core_type = #tpu.core_type<tc>, window_params = [{transform_indices = @transform_0, window_bounds = array<i64: 256, 128>}, {pipeline_mode = #tpu.pipeline_mode<synchronous>, transform_indices = @transform_1, window_bounds = array<i64: 1, 128>}, {pipeline_mode = #tpu.pipeline_mode<synchronous>, transform_indices = @transform_2, window_bounds = array<i64: 1, 128>}, {transform_indices = @transform_3, window_bounds = array<i64: 256, 128>}]} {
    %c0 = arith.constant 0 : index
    %c0_0 = arith.constant 0 : index
    %0 = vector.load %arg1[%c0, %c0_0] : memref<256x128xf32, #tpu.memory_space<vmem>>, vector<256x128xf32>
    %c0_1 = arith.constant 0 : index
    %c0_2 = arith.constant 0 : index
    %1 = vector.load %arg2[%c0_1, %c0_2] : memref<1x128xf32, #tpu.memory_space<vmem>>, vector<1x128xf32>
    %2 = vector.broadcast %1 : vector<1x128xf32> to vector<256x128xf32>
    %3 = arith.mulf %0, %2 : vector<256x128xf32>
    %c0_3 = arith.constant 0 : index
    %c0_4 = arith.constant 0 : index
    %4 = vector.load %arg3[%c0_3, %c0_4] : memref<1x128xf32, #tpu.memory_space<vmem>>, vector<1x128xf32>
    %5 = vector.broadcast %4 : vector<1x128xf32> to vector<256x128xf32>
    %6 = arith.addf %3, %5 : vector<256x128xf32>
    %c0_5 = arith.constant 0 : index
    %c0_6 = arith.constant 0 : index
    %7 = vector.load %arg4[%c0_5, %c0_6] : memref<256x128xf32, #tpu.memory_space<vmem>>, vector<256x128xf32>
    tpu.vector_store %arg4[%c0_5, %c0_6], %6 {strides = array<i32>} : memref<256x128xf32, #tpu.memory_space<vmem>>, vector<256x128xf32>,
    return
  }
  func.func @transform_0(%arg0: i32) -> (i32, i32) {
    %c0_i32 = arith.constant 0 : i32
    %c0_i32_0 = arith.constant 0 : i32
    return %arg0, %c0_i32 : i32, i32
  }
  func.func @transform_1(%arg0: i32) -> (i32, i32) {
    %c0_i32 = arith.constant 0 : i32
    %c0_i32_0 = arith.constant 0 : i32
    %c0_i32_1 = arith.constant 0 : i32
    return %c0_i32, %c0_i32_0 : i32, i32
  }
  func.func @transform_2(%arg0: i32) -> (i32, i32) {
    %c0_i32 = arith.constant 0 : i32
    %c0_i32_0 = arith.constant 0 : i32
    %c0_i32_1 = arith.constant 0 : i32
    return %c0_i32, %c0_i32_0 : i32, i32
  }
  func.func @transform_3(%arg0: i32) -> (i32, i32) {
    %c0_i32 = arith.constant 0 : i32
    %c0_i32_0 = arith.constant 0 : i32
    return %arg0, %c0_i32 : i32, i32
  }
}

</mosaic_0001>

<llo_original>
// kernel: encoder_single_block_1.3
$region0: #{encoder_single_block_1.3}
  #allocation0 [shape = 'u32[]', space=smem, size = 0x4, offset = 0x4, fixed_abs, tag = 'smem constant byte address 0x4 - core index']
  #allocation1 [shape = 'u32[144,128]{1,0:T(1,128)}', space=vmem, size = 0x12000, scoped, tag = 'internal scratch']
  %s0 = inlined_call_operand.vmem [shape: f32[256,128], index: 0, kind: input, shape index: {}]
  %s1 = inlined_call_operand.vmem [shape: f32[1,128], index: 1, kind: input, shape index: {}]
  %s2 = inlined_call_operand.vmem [shape: f32[1,128], index: 2, kind: input, shape index: {}]
  %s3 = inlined_call_operand.vmem [shape: f32[256,128], index: 3, kind: output, shape index: {}]
  %s4 = sld [smem:[#allocation0]]
  $region22: #{encoder_single_block_1.3} parent=0
    _
  %s6 = ssub.s32 1, %s4
  %s7 = scalar_select 0, %s6, %s4
  // Predicated region
  $region2: #{encoder_single_block_1.3} parent=0 // pred_check
    _
  $region3: #{encoder_single_block_1.3} parent=0 // pred_check_branch
    %9 = sbr.rel (0) target = $region5
  $region4: #{encoder_single_block_1.3} parent=0 // pred_region
    _
  $region5: #{encoder_single_block_1.3} parent=0 // pred_fallthru
    _
  // Predicated region
  $region6: #{encoder_single_block_1.3} parent=0 // pred_check
    _
  $region7: #{encoder_single_block_1.3} parent=0 // pred_check_branch
    %11 = sbr.rel (0) target = $region9
  $region8: #{encoder_single_block_1.3} parent=0 // pred_region
    _
  $region9: #{encoder_single_block_1.3} parent=0 // pred_fallthru
    _
  // Predicated region
  $region10: #{encoder_single_block_1.3} parent=0 // pred_check
    _
  $region11: #{encoder_single_block_1.3} parent=0 // pred_check_branch
    %13 = sbr.rel (0) target = $region13
  $region12: #{encoder_single_block_1.3} parent=0 // pred_region
    _
  $region13: #{encoder_single_block_1.3} parent=0 // pred_fallthru
    _
  %v14 = vld [vmem:[%s0] sm:$0xff]
  %v15 = vld [vmem:[%s0 + $0x8] sm:$0xff]
  %v16 = vld [vmem:[%s0 + $0x10] sm:$0xff]
  %v17 = vld [vmem:[%s0 + $0x18] sm:$0xff]
  %v18 = vld [vmem:[%s0 + $0x20] sm:$0xff]
  %v19 = vld [vmem:[%s0 + $0x28] sm:$0xff]
  %v20 = vld [vmem:[%s0 + $0x30] sm:$0xff]
  %v21 = vld [vmem:[%s0 + $0x38] sm:$0xff]
  %v22 = vld [vmem:[%s0 + $0x40] sm:$0xff]
  %v23 = vld [vmem:[%s0 + $0x48] sm:$0xff]
  %v24 = vld [vmem:[%s0 + $0x50] sm:$0xff]
  %v25 = vld [vmem:[%s0 + $0x58] sm:$0xff]
  %v26 = vld [vmem:[%s0 + $0x60] sm:$0xff]
  %v27 = vld [vmem:[%s0 + $0x68] sm:$0xff]
  %v28 = vld [vmem:[%s0 + $0x70] sm:$0xff]
  %v29 = vld [vmem:[%s0 + $0x78] sm:$0xff]
  %v30 = vld [vmem:[%s0 + $0x80] sm:$0xff]
  %v31 = vld [vmem:[%s0 + $0x88] sm:$0xff]
  %v32 = vld [vmem:[%s0 + $0x90] sm:$0xff]
  %v33 = vld [vmem:[%s0 + $0x98] sm:$0xff]
  %v34 = vld [vmem:[%s0 + $0xa0] sm:$0xff]
  %v35 = vld [vmem:[%s0 + $0xa8] sm:$0xff]
  %v36 = vld [vmem:[%s0 + $0xb0] sm:$0xff]
  %v37 = vld [vmem:[%s0 + $0xb8] sm:$0xff]
  %v38 = vld [vmem:[%s0 + $0xc0] sm:$0xff]
  %v39 = vld [vmem:[%s0 + $0xc8] sm:$0xff]
  %v40 = vld [vmem:[%s0 + $0xd0] sm:$0xff]
  %v41 = vld [vmem:[%s0 + $0xd8] sm:$0xff]
  %v42 = vld [vmem:[%s0 + $0xe0] sm:$0xff]
  %v43 = vld [vmem:[%s0 + $0xe8] sm:$0xff]
  %v44 = vld [vmem:[%s0 + $0xf0] sm:$0xff]
  %v45 = vld [vmem:[%s0 + $0xf8] sm:$0xff]
  %v46 = vld [vmem:[%s1] sm:$0x1]
  %v48 = vlaneseq
  %v49 = vshrl.u32 %v48, 7
  %v50 = vsub.s32 0, %v49
  %v51 = vrot.slane %v46, %v50
  %v53 = vmul.f32 %v14, %v51
  %v54 = vmul.f32 %v15, %v51
  %v55 = vmul.f32 %v16, %v51
  %v56 = vmul.f32 %v17, %v51
  %v57 = vmul.f32 %v18, %v51
  %v58 = vmul.f32 %v19, %v51
  %v59 = vmul.f32 %v20, %v51
  %v60 = vmul.f32 %v21, %v51
  %v61 = vmul.f32 %v22, %v51
  %v62 = vmul.f32 %v23, %v51
  %v63 = vmul.f32 %v24, %v51
  %v64 = vmul.f32 %v25, %v51
  %v65 = vmul.f32 %v26, %v51
  %v66 = vmul.f32 %v27, %v51
  %v67 = vmul.f32 %v28, %v51
  %v68 = vmul.f32 %v29, %v51
  %v69 = vmul.f32 %v30, %v51
  %v70 = vmul.f32 %v31, %v51
  %v71 = vmul.f32 %v32, %v51
  %v72 = vmul.f32 %v33, %v51
  %v73 = vmul.f32 %v34, %v51
  %v74 = vmul.f32 %v35, %v51
  %v75 = vmul.f32 %v36, %v51
  %v76 = vmul.f32 %v37, %v51
  %v77 = vmul.f32 %v38, %v51
  %v78 = vmul.f32 %v39, %v51
  %v79 = vmul.f32 %v40, %v51
  %v80 = vmul.f32 %v41, %v51
  %v81 = vmul.f32 %v42, %v51
  %v82 = vmul.f32 %v43, %v51
  %v83 = vmul.f32 %v44, %v51
  %v84 = vmul.f32 %v45, %v51
  %v85 = vld [vmem:[%s2] sm:$0x1]
  %v87 = vlaneseq
  %v88 = vshrl.u32 %v87, 7
  %v89 = vsub.s32 0, %v88
  %v90 = vrot.slane %v85, %v89
  %v92 = vadd.f32 %v53, %v90
  %v93 = vadd.f32 %v54, %v90
  %v94 = vadd.f32 %v55, %v90
  %v95 = vadd.f32 %v56, %v90
  %v96 = vadd.f32 %v57, %v90
  %v97 = vadd.f32 %v58, %v90
  %v98 = vadd.f32 %v59, %v90
  %v99 = vadd.f32 %v60, %v90
  %v100 = vadd.f32 %v61, %v90
  %v101 = vadd.f32 %v62, %v90
  %v102 = vadd.f32 %v63, %v90
  %v103 = vadd.f32 %v64, %v90
  %v104 = vadd.f32 %v65, %v90
  %v105 = vadd.f32 %v66, %v90
  %v106 = vadd.f32 %v67, %v90
  %v107 = vadd.f32 %v68, %v90
  %v108 = vadd.f32 %v69, %v90
  %v109 = vadd.f32 %v70, %v90
  %v110 = vadd.f32 %v71, %v90
  %v111 = vadd.f32 %v72, %v90
  %v112 = vadd.f32 %v73, %v90
  %v113 = vadd.f32 %v74, %v90
  %v114 = vadd.f32 %v75, %v90
  %v115 = vadd.f32 %v76, %v90
  %v116 = vadd.f32 %v77, %v90
  %v117 = vadd.f32 %v78, %v90
  %v118 = vadd.f32 %v79, %v90
  %v119 = vadd.f32 %v80, %v90
  %v120 = vadd.f32 %v81, %v90
  %v121 = vadd.f32 %v82, %v90
  %v122 = vadd.f32 %v83, %v90
  %v123 = vadd.f32 %v84, %v90
  %124 = vst [vmem:[%s3] sm:$0xff] %v92
  %125 = vst [vmem:[%s3 + $0x8] sm:$0xff] %v93
  %126 = vst [vmem:[%s3 + $0x10] sm:$0xff] %v94
  %127 = vst [vmem:[%s3 + $0x18] sm:$0xff] %v95
  %128 = vst [vmem:[%s3 + $0x20] sm:$0xff] %v96
  %129 = vst [vmem:[%s3 + $0x28] sm:$0xff] %v97
  %130 = vst [vmem:[%s3 + $0x30] sm:$0xff] %v98
  %131 = vst [vmem:[%s3 + $0x38] sm:$0xff] %v99
  %132 = vst [vmem:[%s3 + $0x40] sm:$0xff] %v100
  %133 = vst [vmem:[%s3 + $0x48] sm:$0xff] %v101
  %134 = vst [vmem:[%s3 + $0x50] sm:$0xff] %v102
  %135 = vst [vmem:[%s3 + $0x58] sm:$0xff] %v103
  %136 = vst [vmem:[%s3 + $0x60] sm:$0xff] %v104
  %137 = vst [vmem:[%s3 + $0x68] sm:$0xff] %v105
  %138 = vst [vmem:[%s3 + $0x70] sm:$0xff] %v106
  %139 = vst [vmem:[%s3 + $0x78] sm:$0xff] %v107
  %140 = vst [vmem:[%s3 + $0x80] sm:$0xff] %v108
  %141 = vst [vmem:[%s3 + $0x88] sm:$0xff] %v109
  %142 = vst [vmem:[%s3 + $0x90] sm:$0xff] %v110
  %143 = vst [vmem:[%s3 + $0x98] sm:$0xff] %v111
  %144 = vst [vmem:[%s3 + $0xa0] sm:$0xff] %v112
  %145 = vst [vmem:[%s3 + $0xa8] sm:$0xff] %v113
  %146 = vst [vmem:[%s3 + $0xb0] sm:$0xff] %v114
  %147 = vst [vmem:[%s3 + $0xb8] sm:$0xff] %v115
  %148 = vst [vmem:[%s3 + $0xc0] sm:$0xff] %v116
  %149 = vst [vmem:[%s3 + $0xc8] sm:$0xff] %v117
  %150 = vst [vmem:[%s3 + $0xd0] sm:$0xff] %v118
  %151 = vst [vmem:[%s3 + $0xd8] sm:$0xff] %v119
  %152 = vst [vmem:[%s3 + $0xe0] sm:$0xff] %v120
  %153 = vst [vmem:[%s3 + $0xe8] sm:$0xff] %v121
  %154 = vst [vmem:[%s3 + $0xf0] sm:$0xff] %v122
  %155 = vst [vmem:[%s3 + $0xf8] sm:$0xff] %v123
  // Predicated region
  $region14: #{encoder_single_block_1.3} parent=0 // pred_check
    _
  $region15: #{encoder_single_block_1.3} parent=0 // pred_check_branch
    %157 = sbr.rel (0) target = $region17
  $region16: #{encoder_single_block_1.3} parent=0 // pred_region
    _
  $region17: #{encoder_single_block_1.3} parent=0 // pred_fallthru
    _
  // Predicated region
  $region18: #{encoder_single_block_1.3} parent=0 // pred_check
    _
  $region19: #{encoder_single_block_1.3} parent=0 // pred_check_branch
    %159 = sbr.rel (0) target = $region21
  $region20: #{encoder_single_block_1.3} parent=0 // pred_region
    _
  $region21: #{encoder_single_block_1.3} parent=0 // pred_fallthru
    _

// kernel: encoder_single_block_1.2
$region0: #{encoder_single_block_1.2}
  #allocation0 [shape = 'u32[]', space=smem, size = 0x4, offset = 0x4, fixed_abs, tag = 'smem constant byte address 0x4 - core index']
  #allocation1 [shape = 'u32[144,128]{1,0:T(1,128)}', space=vmem, size = 0x12000, scoped, tag = 'internal scratch']
  %s0 = inlined_call_operand.vmem [shape: bf16[256,128], index: 0, kind: input, shape index: {}]
  %s1 = inlined_call_operand.vmem [shape: bf16[128,128], index: 1, kind: input, shape index: {}]
  %s2 = inlined_call_operand.vmem [shape: f32[256,128], index: 2, kind: output, shape index: {0}]
  %s3 = inlined_call_operand.vmem [shape: f32[1,128], index: 3, kind: output, shape index: {1}]
  %s4 = inlined_call_operand.vmem [shape: f32[1,128], index: 4, kind: output, shape index: {2}]
  %5 = xla_tuple %s2, %s3, %s4
  %s6 = sld [smem:[#allocation0]]
  $region38: #{encoder_single_block_1.2} parent=0
    _
  %s8 = ssub.s32 1, %s6
  %s9 = scalar_select 0, %s8, %s6
  // Predicated region
  $region2: #{encoder_single_block_1.2} parent=0 // pred_check
    _
  $region3: #{encoder_single_block_1.2} parent=0 // pred_check_branch
    %11 = sbr.rel (0) target = $region5
  $region4: #{encoder_single_block_1.2} parent=0 // pred_region
    _
  $region5: #{encoder_single_block_1.2} parent=0 // pred_fallthru
    _
  // Predicated region
  $region6: #{encoder_single_block_1.2} parent=0 // pred_check
    _
  $region7: #{encoder_single_block_1.2} parent=0 // pred_check_branch
    %13 = sbr.rel (0) target = $region9
  $region8: #{encoder_single_block_1.2} parent=0 // pred_region
    _
  $region9: #{encoder_single_block_1.2} parent=0 // pred_fallthru
    _
  %v15 = vld [vmem:[%s0] sm:$0xf]
  %v16 = vld [vmem:[%s0 + $0x4] sm:$0xf]
  %v17 = vld [vmem:[%s0 + $0x8] sm:$0xf]
  %v18 = vld [vmem:[%s0 + $0xc] sm:$0xf]
  %v19 = vld [vmem:[%s0 + $0x10] sm:$0xf]
  %v20 = vld [vmem:[%s0 + $0x14] sm:$0xf]
  %v21 = vld [vmem:[%s0 + $0x18] sm:$0xf]
  %v22 = vld [vmem:[%s0 + $0x1c] sm:$0xf]
  %v23 = vld [vmem:[%s0 + $0x20] sm:$0xf]
  %v24 = vld [vmem:[%s0 + $0x24] sm:$0xf]
  %v25 = vld [vmem:[%s0 + $0x28] sm:$0xf]
  %v26 = vld [vmem:[%s0 + $0x2c] sm:$0xf]
  %v27 = vld [vmem:[%s0 + $0x30] sm:$0xf]
  %v28 = vld [vmem:[%s0 + $0x34] sm:$0xf]
  %v29 = vld [vmem:[%s0 + $0x38] sm:$0xf]
  %v30 = vld [vmem:[%s0 + $0x3c] sm:$0xf]
  %v31 = vld [vmem:[%s0 + $0x40] sm:$0xf]
  %v32 = vld [vmem:[%s0 + $0x44] sm:$0xf]
  %v33 = vld [vmem:[%s0 + $0x48] sm:$0xf]
  %v34 = vld [vmem:[%s0 + $0x4c] sm:$0xf]
  %v35 = vld [vmem:[%s0 + $0x50] sm:$0xf]
  %v36 = vld [vmem:[%s0 + $0x54] sm:$0xf]
  %v37 = vld [vmem:[%s0 + $0x58] sm:$0xf]
  %v38 = vld [vmem:[%s0 + $0x5c] sm:$0xf]
  %v39 = vld [vmem:[%s0 + $0x60] sm:$0xf]
  %v40 = vld [vmem:[%s0 + $0x64] sm:$0xf]
  %v41 = vld [vmem:[%s0 + $0x68] sm:$0xf]
  %v42 = vld [vmem:[%s0 + $0x6c] sm:$0xf]
  %v43 = vld [vmem:[%s0 + $0x70] sm:$0xf]
  %v44 = vld [vmem:[%s0 + $0x74] sm:$0xf]
  %v45 = vld [vmem:[%s0 + $0x78] sm:$0xf]
  %v46 = vld [vmem:[%s0 + $0x7c] sm:$0xf]
  %v47 = vld [vmem:[%s1] sm:$0xf]
  %v48 = vld [vmem:[%s1 + $0x4] sm:$0xf]
  %v49 = vld [vmem:[%s1 + $0x8] sm:$0xf]
  %v50 = vld [vmem:[%s1 + $0xc] sm:$0xf]
  %v51 = vld [vmem:[%s1 + $0x10] sm:$0xf]
  %v52 = vld [vmem:[%s1 + $0x14] sm:$0xf]
  %v53 = vld [vmem:[%s1 + $0x18] sm:$0xf]
  %v54 = vld [vmem:[%s1 + $0x1c] sm:$0xf]
  %v55 = vld [vmem:[%s1 + $0x20] sm:$0xf]
  %v56 = vld [vmem:[%s1 + $0x24] sm:$0xf]
  %v57 = vld [vmem:[%s1 + $0x28] sm:$0xf]
  %v58 = vld [vmem:[%s1 + $0x2c] sm:$0xf]
  %v59 = vld [vmem:[%s1 + $0x30] sm:$0xf]
  %v60 = vld [vmem:[%s1 + $0x34] sm:$0xf]
  %v61 = vld [vmem:[%s1 + $0x38] sm:$0xf]
  %v62 = vld [vmem:[%s1 + $0x3c] sm:$0xf]
  %v95 = vunpack.c.l.b16 %v15
  %v96 = vunpack.c.l.b16 %v16
  %v97 = vunpack.c.l.b16 %v17
  %v98 = vunpack.c.l.b16 %v18
  %v99 = vunpack.c.l.b16 %v19
  %v100 = vunpack.c.l.b16 %v20
  %v101 = vunpack.c.l.b16 %v21
  %v102 = vunpack.c.l.b16 %v22
  %v103 = vunpack.c.l.b16 %v23
  %v104 = vunpack.c.l.b16 %v24
  %v105 = vunpack.c.l.b16 %v25
  %v106 = vunpack.c.l.b16 %v26
  %v107 = vunpack.c.l.b16 %v27
  %v108 = vunpack.c.l.b16 %v28
  %v109 = vunpack.c.l.b16 %v29
  %v110 = vunpack.c.l.b16 %v30
  %v111 = vunpack.c.l.b16 %v31
  %v112 = vunpack.c.l.b16 %v32
  %v113 = vunpack.c.l.b16 %v33
  %v114 = vunpack.c.l.b16 %v34
  %v115 = vunpack.c.l.b16 %v35
  %v116 = vunpack.c.l.b16 %v36
  %v117 = vunpack.c.l.b16 %v37
  %v118 = vunpack.c.l.b16 %v38
  %v119 = vunpack.c.l.b16 %v39
  %v120 = vunpack.c.l.b16 %v40
  %v121 = vunpack.c.l.b16 %v41
  %v122 = vunpack.c.l.b16 %v42
  %v123 = vunpack.c.l.b16 %v43
  %v124 = vunpack.c.l.b16 %v44
  %v125 = vunpack.c.l.b16 %v45
  %v126 = vunpack.c.l.b16 %v46
  %v127 = vpack.c.b16 %v96, %v95
  %v128 = vpack.c.b16 %v98, %v97
  %v129 = vpack.c.b16 %v100, %v99
  %v130 = vpack.c.b16 %v102, %v101
  %v131 = vpack.c.b16 %v104, %v103
  %v132 = vpack.c.b16 %v106, %v105
  %v133 = vpack.c.b16 %v108, %v107
  %v134 = vpack.c.b16 %v110, %v109
  %v135 = vpack.c.b16 %v112, %v111
  %v136 = vpack.c.b16 %v114, %v113
  %v137 = vpack.c.b16 %v116, %v115
  %v138 = vpack.c.b16 %v118, %v117
  %v139 = vpack.c.b16 %v120, %v119
  %v140 = vpack.c.b16 %v122, %v121
  %v141 = vpack.c.b16 %v124, %v123
  %v142 = vpack.c.b16 %v126, %v125
  %v175 = vunpack.c.l.b16 %v47
  %v176 = vunpack.c.l.b16 %v48
  %v177 = vunpack.c.l.b16 %v49
  %v178 = vunpack.c.l.b16 %v50
  %v179 = vunpack.c.l.b16 %v51
  %v180 = vunpack.c.l.b16 %v52
  %v181 = vunpack.c.l.b16 %v53
  %v182 = vunpack.c.l.b16 %v54
  %v183 = vunpack.c.l.b16 %v55
  %v184 = vunpack.c.l.b16 %v56
  %v185 = vunpack.c.l.b16 %v57
  %v186 = vunpack.c.l.b16 %v58
  %v187 = vunpack.c.l.b16 %v59
  %v188 = vunpack.c.l.b16 %v60
  %v189 = vunpack.c.l.b16 %v61
  %v190 = vunpack.c.l.b16 %v62
  %v191 = vpack.c.b16 %v176, %v175
  %v192 = vpack.c.b16 %v178, %v177
  %v193 = vpack.c.b16 %v180, %v179
  %v194 = vpack.c.b16 %v182, %v181
  %v195 = vpack.c.b16 %v184, %v183
  %v196 = vpack.c.b16 %v186, %v185
  %v197 = vpack.c.b16 %v188, %v187
  %v198 = vpack.c.b16 %v190, %v189
  %207 = vmatprep.subr.bf16.mxu0 0
  %208 = vmatpush1.bf16.msra.mxu0 %v198
  %209 = vmatprep.subr.bf16.mxu0 0
  %210 = vmatpush1.bf16.msra.mxu0 %v197
  %211 = vmatprep.subr.bf16.mxu0 0
  %212 = vmatpush1.bf16.msra.mxu0 %v196
  %213 = vmatprep.subr.bf16.mxu0 0
  %214 = vmatpush1.bf16.msra.mxu0 %v195
  %215 = vmatprep.subr.bf16.mxu0 0
  %216 = vmatpush1.bf16.msra.mxu0 %v194
  %217 = vmatprep.subr.bf16.mxu0 0
  %218 = vmatpush1.bf16.msra.mxu0 %v193
  %219 = vmatprep.subr.bf16.mxu0 0
  %220 = vmatpush1.bf16.msra.mxu0 %v192
  %221 = vmatprep.subr.bf16.mxu0 0
  %222 = vmatpush1.bf16.msra.mxu0 %v191
  %223 = vmatprep.subr.bf16.mxu0 0
  %224 = vmatpush2.bf16.msra.mxu0 0
  %225 = vmatprep.subr.bf16.mxu0 0
  %226 = vmatpush2.bf16.msra.mxu0 0
  %227 = vmatprep.subr.bf16.mxu0 0
  %228 = vmatpush2.bf16.msra.mxu0 0
  %229 = vmatprep.subr.bf16.mxu0 0
  %230 = vmatpush2.bf16.msra.mxu0 0
  %231 = vmatprep.subr.bf16.mxu0 0
  %232 = vmatpush2.bf16.msra.mxu0 0
  %233 = vmatprep.subr.bf16.mxu0 0
  %234 = vmatpush2.bf16.msra.mxu0 0
  %235 = vmatprep.subr.bf16.mxu0 0
  %236 = vmatpush2.bf16.msra.mxu0 0
  %237 = vmatprep.subr.bf16.mxu0 0
  %238 = vmatpush2.bf16.msra.mxu0 0
  %239 = vmatprep.mubr.bf16.mxu0 0
  %240 = vmatmul.mubr.bf16.gmra.mxu0 %v127
  %v241 = vpop.f32.mrf.mxu0
  %v242 = vadd.f32 0.0, %v241
  %v243 = vpop.f32.mrf.mxu0
  %v244 = vpop.f32.mrf.mxu0
  %v245 = vadd.f32 0.0, %v244
  %v246 = vpop.f32.mrf.mxu0
  %247 = vmatprep.mubr.bf16.mxu0 0
  %248 = vmatmul.mubr.bf16.gmra.mxu0 %v128
  %v249 = vpop.f32.mrf.mxu0
  %v250 = vadd.f32 0.0, %v249
  %v251 = vpop.f32.mrf.mxu0
  %v252 = vpop.f32.mrf.mxu0
  %v253 = vadd.f32 0.0, %v252
  %v254 = vpop.f32.mrf.mxu0
  %255 = vmatprep.mubr.bf16.mxu0 0
  %256 = vmatmul.mubr.bf16.gmra.mxu0 %v129
  %v257 = vpop.f32.mrf.mxu0
  %v258 = vadd.f32 0.0, %v257
  %v259 = vpop.f32.mrf.mxu0
  %v260 = vpop.f32.mrf.mxu0
  %v261 = vadd.f32 0.0, %v260
  %v262 = vpop.f32.mrf.mxu0
  %263 = vmatprep.mubr.bf16.mxu0 0
  %264 = vmatmul.mubr.bf16.gmra.mxu0 %v130
  %v265 = vpop.f32.mrf.mxu0
  %v266 = vadd.f32 0.0, %v265
  %v267 = vpop.f32.mrf.mxu0
  %v268 = vpop.f32.mrf.mxu0
  %v269 = vadd.f32 0.0, %v268
  %v270 = vpop.f32.mrf.mxu0
  %271 = vmatprep.mubr.bf16.mxu0 0
  %272 = vmatmul.mubr.bf16.gmra.mxu0 %v131
  %v273 = vpop.f32.mrf.mxu0
  %v274 = vadd.f32 0.0, %v273
  %v275 = vpop.f32.mrf.mxu0
  %v276 = vpop.f32.mrf.mxu0
  %v277 = vadd.f32 0.0, %v276
  %v278 = vpop.f32.mrf.mxu0
  %279 = vmatprep.mubr.bf16.mxu0 0
  %280 = vmatmul.mubr.bf16.gmra.mxu0 %v132
  %v281 = vpop.f32.mrf.mxu0
  %v282 = vadd.f32 0.0, %v281
  %v283 = vpop.f32.mrf.mxu0
  %v284 = vpop.f32.mrf.mxu0
  %v285 = vadd.f32 0.0, %v284
  %v286 = vpop.f32.mrf.mxu0
  %287 = vmatprep.mubr.bf16.mxu0 0
  %288 = vmatmul.mubr.bf16.gmra.mxu0 %v133
  %v289 = vpop.f32.mrf.mxu0
  %v290 = vadd.f32 0.0, %v289
  %v291 = vpop.f32.mrf.mxu0
  %v292 = vpop.f32.mrf.mxu0
  %v293 = vadd.f32 0.0, %v292
  %v294 = vpop.f32.mrf.mxu0
  %295 = vmatprep.mubr.bf16.mxu0 0
  %296 = vmatmul.mubr.bf16.gmra.mxu0 %v134
  %v297 = vpop.f32.mrf.mxu0
  %v298 = vadd.f32 0.0, %v297
  %v299 = vpop.f32.mrf.mxu0
  %v300 = vpop.f32.mrf.mxu0
  %v301 = vadd.f32 0.0, %v300
  %v302 = vpop.f32.mrf.mxu0
  %303 = vmatprep.mubr.bf16.mxu0 0
  %304 = vmatmul.mubr.bf16.gmra.mxu0 %v135
  %v305 = vpop.f32.mrf.mxu0
  %v306 = vadd.f32 0.0, %v305
  %v307 = vpop.f32.mrf.mxu0
  %v308 = vpop.f32.mrf.mxu0
  %v309 = vadd.f32 0.0, %v308
  %v310 = vpop.f32.mrf.mxu0
  %311 = vmatprep.mubr.bf16.mxu0 0
  %312 = vmatmul.mubr.bf16.gmra.mxu0 %v136
  %v313 = vpop.f32.mrf.mxu0
  %v314 = vadd.f32 0.0, %v313
  %v315 = vpop.f32.mrf.mxu0
  %v316 = vpop.f32.mrf.mxu0
  %v317 = vadd.f32 0.0, %v316
  %v318 = vpop.f32.mrf.mxu0
  %319 = vmatprep.mubr.bf16.mxu0 0
  %320 = vmatmul.mubr.bf16.gmra.mxu0 %v137
  %v321 = vpop.f32.mrf.mxu0
  %v322 = vadd.f32 0.0, %v321
  %v323 = vpop.f32.mrf.mxu0
  %v324 = vpop.f32.mrf.mxu0
  %v325 = vadd.f32 0.0, %v324
  %v326 = vpop.f32.mrf.mxu0
  %327 = vmatprep.mubr.bf16.mxu0 0
  %328 = vmatmul.mubr.bf16.gmra.mxu0 %v138
  %v329 = vpop.f32.mrf.mxu0
  %v330 = vadd.f32 0.0, %v329
  %v331 = vpop.f32.mrf.mxu0
  %v332 = vpop.f32.mrf.mxu0
  %v333 = vadd.f32 0.0, %v332
  %v334 = vpop.f32.mrf.mxu0
  %335 = vmatprep.mubr.bf16.mxu0 0
  %336 = vmatmul.mubr.bf16.gmra.mxu0 %v139
  %v337 = vpop.f32.mrf.mxu0
  %v338 = vadd.f32 0.0, %v337
  %v339 = vpop.f32.mrf.mxu0
  %v340 = vpop.f32.mrf.mxu0
  %v341 = vadd.f32 0.0, %v340
  %v342 = vpop.f32.mrf.mxu0
  %343 = vmatprep.mubr.bf16.mxu0 0
  %344 = vmatmul.mubr.bf16.gmra.mxu0 %v140
  %v345 = vpop.f32.mrf.mxu0
  %v346 = vadd.f32 0.0, %v345
  %v347 = vpop.f32.mrf.mxu0
  %v348 = vpop.f32.mrf.mxu0
  %v349 = vadd.f32 0.0, %v348
  %v350 = vpop.f32.mrf.mxu0
  %351 = vmatprep.mubr.bf16.mxu0 0
  %352 = vmatmul.mubr.bf16.gmra.mxu0 %v141
  %v353 = vpop.f32.mrf.mxu0
  %v354 = vadd.f32 0.0, %v353
  %v355 = vpop.f32.mrf.mxu0
  %v356 = vpop.f32.mrf.mxu0
  %v357 = vadd.f32 0.0, %v356
  %v358 = vpop.f32.mrf.mxu0
  %359 = vmatprep.mubr.bf16.mxu0 0
  %360 = vmatmul.mubr.bf16.gmra.mxu0 %v142
  %v361 = vpop.f32.mrf.mxu0
  %v362 = vadd.f32 0.0, %v361
  %v363 = vpop.f32.mrf.mxu0
  %v364 = vpop.f32.mrf.mxu0
  %v365 = vadd.f32 0.0, %v364
  %v366 = vpop.f32.mrf.mxu0
  %367 = vdwg.mxu0
  %368 = vst [vmem:[%s2] sm:$0xff] %v242
  %369 = vst [vmem:[%s2 + $0x8] sm:$0xff] %v245
  %370 = vst [vmem:[%s2 + $0x10] sm:$0xff] %v250
  %371 = vst [vmem:[%s2 + $0x18] sm:$0xff] %v253
  %372 = vst [vmem:[%s2 + $0x20] sm:$0xff] %v258
  %373 = vst [vmem:[%s2 + $0x28] sm:$0xff] %v261
  %374 = vst [vmem:[%s2 + $0x30] sm:$0xff] %v266
  %375 = vst [vmem:[%s2 + $0x38] sm:$0xff] %v269
  %376 = vst [vmem:[%s2 + $0x40] sm:$0xff] %v274
  %377 = vst [vmem:[%s2 + $0x48] sm:$0xff] %v277
  %378 = vst [vmem:[%s2 + $0x50] sm:$0xff] %v282
  %379 = vst [vmem:[%s2 + $0x58] sm:$0xff] %v285
  %380 = vst [vmem:[%s2 + $0x60] sm:$0xff] %v290
  %381 = vst [vmem:[%s2 + $0x68] sm:$0xff] %v293
  %382 = vst [vmem:[%s2 + $0x70] sm:$0xff] %v298
  %383 = vst [vmem:[%s2 + $0x78] sm:$0xff] %v301
  %384 = vst [vmem:[%s2 + $0x80] sm:$0xff] %v306
  %385 = vst [vmem:[%s2 + $0x88] sm:$0xff] %v309
  %386 = vst [vmem:[%s2 + $0x90] sm:$0xff] %v314
  %387 = vst [vmem:[%s2 + $0x98] sm:$0xff] %v317
  %388 = vst [vmem:[%s2 + $0xa0] sm:$0xff] %v322
  %389 = vst [vmem:[%s2 + $0xa8] sm:$0xff] %v325
  %390 = vst [vmem:[%s2 + $0xb0] sm:$0xff] %v330
  %391 = vst [vmem:[%s2 + $0xb8] sm:$0xff] %v333
  %392 = vst [vmem:[%s2 + $0xc0] sm:$0xff] %v338
  %393 = vst [vmem:[%s2 + $0xc8] sm:$0xff] %v341
  %394 = vst [vmem:[%s2 + $0xd0] sm:$0xff] %v346
  %395 = vst [vmem:[%s2 + $0xd8] sm:$0xff] %v349
  %396 = vst [vmem:[%s2 + $0xe0] sm:$0xff] %v354
  %397 = vst [vmem:[%s2 + $0xe8] sm:$0xff] %v357
  %398 = vst [vmem:[%s2 + $0xf0] sm:$0xff] %v362
  %399 = vst [vmem:[%s2 + $0xf8] sm:$0xff] %v365
  %p400 = scmp.eq.s32.totalorder 0, 0
  // Predicated region
  $region10: #{encoder_single_block_1.2} parent=0 // pred_check
    %p401 = pneg %p400
  $region11: #{encoder_single_block_1.2} parent=0 // pred_check_branch
    %403 = sbr.rel (%p401) target = $region13
  $region12: #{encoder_single_block_1.2} parent=0 // pred_region
    %404 = vst [vmem:[%s3] sm:$0x1] 0.0
    %405 = vst [vmem:[%s4] sm:$0x1] 0.0
  $region13: #{encoder_single_block_1.2} parent=0 // pred_fallthru
    _
  %v406 = vld [vmem:[%s3] sm:$0x1]
  %v407 = vadd.f32 %v242, %v245
  %v408 = vadd.f32 %v407, %v250
  %v409 = vadd.f32 %v408, %v253
  %v410 = vadd.f32 %v409, %v258
  %v411 = vadd.f32 %v410, %v261
  %v412 = vadd.f32 %v411, %v266
  %v413 = vadd.f32 %v412, %v269
  %v414 = vadd.f32 %v413, %v274
  %v415 = vadd.f32 %v414, %v277
  %v416 = vadd.f32 %v415, %v282
  %v417 = vadd.f32 %v416, %v285
  %v418 = vadd.f32 %v417, %v290
  %v419 = vadd.f32 %v418, %v293
  %v420 = vadd.f32 %v419, %v298
  %v421 = vadd.f32 %v420, %v301
  %v422 = vadd.f32 %v421, %v306
  %v423 = vadd.f32 %v422, %v309
  %v424 = vadd.f32 %v423, %v314
  %v425 = vadd.f32 %v424, %v317
  %v426 = vadd.f32 %v425, %v322
  %v427 = vadd.f32 %v426, %v325
  %v428 = vadd.f32 %v427, %v330
  %v429 = vadd.f32 %v428, %v333
  %v430 = vadd.f32 %v429, %v338
  %v431 = vadd.f32 %v430, %v341
  %v432 = vadd.f32 %v431, %v346
  %v433 = vadd.f32 %v432, %v349
  %v434 = vadd.f32 %v433, %v354
  %v435 = vadd.f32 %v434, %v357
  %v436 = vadd.f32 %v435, %v362
  %v437 = vadd.f32 %v436, %v365
  %v438 = vrot.slane %v437, 4
  %v439 = vadd.f32 %v437, %v438
  %v440 = vrot.slane %v439, 2
  %v441 = vadd.f32 %v439, %v440
  %v442 = vrot.slane %v441, 1
  %v443 = vadd.f32 %v441, %v442
  %v444 = vadd.f32 %v406, %v443
  %445 = vst [vmem:[%s3] sm:$0x1] %v444
  %v446 = vld [vmem:[%s4] sm:$0x1]
  %v447 = vmul.f32 %v242, %v242
  %v448 = vmul.f32 %v245, %v245
  %v449 = vmul.f32 %v250, %v250
  %v450 = vmul.f32 %v253, %v253
  %v451 = vmul.f32 %v258, %v258
  %v452 = vmul.f32 %v261, %v261
  %v453 = vmul.f32 %v266, %v266
  %v454 = vmul.f32 %v269, %v269
  %v455 = vmul.f32 %v274, %v274
  %v456 = vmul.f32 %v277, %v277
  %v457 = vmul.f32 %v282, %v282
  %v458 = vmul.f32 %v285, %v285
  %v459 = vmul.f32 %v290, %v290
  %v460 = vmul.f32 %v293, %v293
  %v461 = vmul.f32 %v298, %v298
  %v462 = vmul.f32 %v301, %v301
  %v463 = vmul.f32 %v306, %v306
  %v464 = vmul.f32 %v309, %v309
  %v465 = vmul.f32 %v314, %v314
  %v466 = vmul.f32 %v317, %v317
  %v467 = vmul.f32 %v322, %v322
  %v468 = vmul.f32 %v325, %v325
  %v469 = vmul.f32 %v330, %v330
  %v470 = vmul.f32 %v333, %v333
  %v471 = vmul.f32 %v338, %v338
  %v472 = vmul.f32 %v341, %v341
  %v473 = vmul.f32 %v346, %v346
  %v474 = vmul.f32 %v349, %v349
  %v475 = vmul.f32 %v354, %v354
  %v476 = vmul.f32 %v357, %v357
  %v477 = vmul.f32 %v362, %v362
  %v478 = vmul.f32 %v365, %v365
  %v479 = vadd.f32 %v447, %v448
  %v480 = vadd.f32 %v479, %v449
  %v481 = vadd.f32 %v480, %v450
  %v482 = vadd.f32 %v481, %v451
  %v483 = vadd.f32 %v482, %v452
  %v484 = vadd.f32 %v483, %v453
  %v485 = vadd.f32 %v484, %v454
  %v486 = vadd.f32 %v485, %v455
  %v487 = vadd.f32 %v486, %v456
  %v488 = vadd.f32 %v487, %v457
  %v489 = vadd.f32 %v488, %v458
  %v490 = vadd.f32 %v489, %v459
  %v491 = vadd.f32 %v490, %v460
  %v492 = vadd.f32 %v491, %v461
  %v493 = vadd.f32 %v492, %v462
  %v494 = vadd.f32 %v493, %v463
  %v495 = vadd.f32 %v494, %v464
  %v496 = vadd.f32 %v495, %v465
  %v497 = vadd.f32 %v496, %v466
  %v498 = vadd.f32 %v497, %v467
  %v499 = vadd.f32 %v498, %v468
  %v500 = vadd.f32 %v499, %v469
  %v501 = vadd.f32 %v500, %v470
  %v502 = vadd.f32 %v501, %v471
  %v503 = vadd.f32 %v502, %v472
  %v504 = vadd.f32 %v503, %v473
  %v505 = vadd.f32 %v504, %v474
  %v506 = vadd.f32 %v505, %v475
  %v507 = vadd.f32 %v506, %v476
  %v508 = vadd.f32 %v507, %v477
  %v509 = vadd.f32 %v508, %v478
  %v510 = vrot.slane %v509, 4
  %v511 = vadd.f32 %v509, %v510
  %v512 = vrot.slane %v511, 2
  %v513 = vadd.f32 %v511, %v512
  %v514 = vrot.slane %v513, 1
  %v515 = vadd.f32 %v513, %v514
  %v516 = vadd.f32 %v446, %v515
  %517 = vst [vmem:[%s4] sm:$0x1] %v516
  // Predicated region
  $region14: #{encoder_single_block_1.2} parent=0 // pred_check
    _
  $region15: #{encoder_single_block_1.2} parent=0 // pred_check_branch
    %519 = sbr.rel (0) target = $region17
  $region16: #{encoder_single_block_1.2} parent=0 // pred_region
    _
  $region17: #{encoder_single_block_1.2} parent=0 // pred_fallthru
    _
  // Predicated region
  $region18: #{encoder_single_block_1.2} parent=0 // pred_check
    _
  $region19: #{encoder_single_block_1.2} parent=0 // pred_check_branch
    %521 = sbr.rel (0) target = $region21
  $region20: #{encoder_single_block_1.2} parent=0 // pred_region
    _
  $region21: #{encoder_single_block_1.2} parent=0 // pred_fallthru
    _
  // Predicated region
  $region22: #{encoder_single_block_1.2} parent=0 // pred_check
    _
  $region23: #{encoder_single_block_1.2} parent=0 // pred_check_branch
    %523 = sbr.rel (0) target = $region25
  $region24: #{encoder_single_block_1.2} parent=0 // pred_region
    _
  $region25: #{encoder_single_block_1.2} parent=0 // pred_fallthru
    _
  // Predicated region
  $region26: #{encoder_single_block_1.2} parent=0 // pred_check
    _
  $region27: #{encoder_single_block_1.2} parent=0 // pred_check_branch
    %525 = sbr.rel (0) target = $region29
  $region28: #{encoder_single_block_1.2} parent=0 // pred_region
    _
  $region29: #{encoder_single_block_1.2} parent=0 // pred_fallthru
    _
  // Predicated region
  $region30: #{encoder_single_block_1.2} parent=0 // pred_check
    _
  $region31: #{encoder_single_block_1.2} parent=0 // pred_check_branch
    %527 = sbr.rel (0) target = $region33
  $region32: #{encoder_single_block_1.2} parent=0 // pred_region
    _
  $region33: #{encoder_single_block_1.2} parent=0 // pred_fallthru
    _
  // Predicated region
  $region34: #{encoder_single_block_1.2} parent=0 // pred_check
    _
  $region35: #{encoder_single_block_1.2} parent=0 // pred_check_branch
    %529 = sbr.rel (0) target = $region37
  $region36: #{encoder_single_block_1.2} parent=0 // pred_region
    _
  $region37: #{encoder_single_block_1.2} parent=0 // pred_fallthru
    _

</llo_original>
